<compile_context>
chip_gen: v5e
topology: v5e:2x2
jax: 0.10.0
libtpu: 0.0.40
codegen_flags: <defaults>
</compile_context>

<pallas_src>
import jax
import jax.numpy as jnp
from jax.experimental import pallas as pl
from jax.experimental.pallas import tpu as pltpu

EPS = 1e-5
NEG_SLOPE = 0.01                    # PyTorch LeakyReLU default
VMEM_LIMIT_BYTES = 48 * 1024 * 1024 # headroom under v7x's 64 MiB, big tiles on v5e/v6e


def _round_up(x, m):
    return (x + m - 1) // m * m


# --------------------------------------------------------------------------- #
# Kernels
# --------------------------------------------------------------------------- #
def _conv_stats_kernel(p_ref, w_ref, y_ref, s_ref):
    """Conv (im2col matmul) for one M-tile + per-tile partial BN statistics.

    p_ref: (TILE_M, Kpad) bf16 patches      w_ref: (Kpad, Cpad) bf16 weights
    y_ref: (TILE_M, Cpad) f32 conv output   s_ref: (1, 8, Cpad) f32 [row0=sum, row1=sumsq]
    """
    y = jnp.dot(p_ref[...], w_ref[...], preferred_element_type=jnp.float32)
    y_ref[...] = y

    cpad = y.shape[1]
    ssum = jnp.sum(y, axis=0, keepdims=True)        # (1, Cpad)
    ssq = jnp.sum(y * y, axis=0, keepdims=True)     # (1, Cpad)
    row = jax.lax.broadcasted_iota(jnp.int32, (8, cpad), 0)
    stats = (jnp.where(row == 0, 1.0, 0.0) * ssum
             + jnp.where(row == 1, 1.0, 0.0) * ssq)  # (8, Cpad), rows 2..7 zero
    s_ref[...] = stats[None]


def _bn_lrelu_kernel(y_ref, scale_ref, shift_ref, o_ref):
    """Folded BatchNorm affine + LeakyReLU: one FMA + one select per element."""
    z = y_ref[...] * scale_ref[...] + shift_ref[...]
    o_ref[...] = jnp.where(z >= 0, z, NEG_SLOPE * z).astype(o_ref.dtype)


# --------------------------------------------------------------------------- #
# Wrapper glue
# --------------------------------------------------------------------------- #
def _im2col_3x3_s1(x_nhwc):
    """Reflect-pad by 1 and extract 3x3 stride-1 patches. Returns (N*H*W, 9*C)."""
    n, h, w, c = x_nhwc.shape
    xp = jnp.pad(x_nhwc, ((0, 0), (1, 1), (1, 1), (0, 0)), mode="reflect")
    cols = [xp[:, kh:kh + h, kw:kw + w, :] for kh in range(3) for kw in range(3)]
    p = jnp.stack(cols, axis=3)                      # (N, H, W, 9, C)
    return p.reshape(n * h * w, 9 * c)               # K-order = (kh, kw, cin)


def _pick_tile_m(kpad, cpad, vmem_budget_bytes=24 * 1024 * 1024):
    # Double-buffered bf16 patch tile + f32 y tile per row, resident bf16 weights.
    per_row = 2 * (kpad * 2 + cpad * 4)
    fixed = 2 * kpad * cpad * 2
    tile = (vmem_budget_bytes - fixed) // max(per_row, 1)
    tile = max(8, min(int(tile), 4096))
    return (tile // 8) * 8


def _conv_bn_lrelu(x_nhwc, weight, gamma, beta, *, tile_m=None):
    """One Conv(3x3,s1,reflect,no-bias) -> BN(batch stats) -> LeakyReLU layer."""
    n, h, w, cin = x_nhwc.shape
    cout = weight.shape[0]
    m = n * h * w
    k = 9 * cin
    kpad = _round_up(k, 128)
    cpad = _round_up(cout, 128)

    if tile_m is None:
        tile_m = _pick_tile_m(kpad, cpad)
    tile_m = _round_up(min(tile_m, _round_up(m, 8)), 8)
    mpad = _round_up(m, tile_m)
    num_tiles = mpad // tile_m

    # Patches: (Mpad, Kpad) bf16, zero-padded rows/cols (zeros contribute nothing).
    patches = _im2col_3x3_s1(x_nhwc)
    patches = jnp.pad(patches, ((0, mpad - m), (0, kpad - k))).astype(jnp.bfloat16)
    # Weights: (Kpad, Cpad) bf16, K-order (kh, kw, cin) to match patches.
    w_mat = jnp.transpose(weight, (2, 3, 1, 0)).reshape(k, cout)
    w_mat = jnp.pad(w_mat, ((0, kpad - k), (0, cpad - cout))).astype(jnp.bfloat16)

    conv_cost = pl.CostEstimate(
        flops=2 * mpad * kpad * cpad,
        transcendentals=0,
        bytes_accessed=mpad * kpad * 2 + kpad * cpad * 2
        + mpad * cpad * 4 + num_tiles * 8 * cpad * 4,
    )

    # ---- Pass 1: tiled conv + per-tile partial (sum, sumsq) --------------- #
    y_pad, stats = pl.pallas_call(
        _conv_stats_kernel,
        grid=(num_tiles,),
        in_specs=[
            pl.BlockSpec((tile_m, kpad), lambda i: (i, 0)),
            pl.BlockSpec((kpad, cpad), lambda i: (0, 0)),
        ],
        out_specs=(
            pl.BlockSpec((tile_m, cpad), lambda i: (i, 0)),
            pl.BlockSpec((1, 8, cpad), lambda i: (i, 0, 0)),
        ),
        out_shape=(
            jax.ShapeDtypeStruct((mpad, cpad), jnp.float32),
            jax.ShapeDtypeStruct((num_tiles, 8, cpad), jnp.float32),
        ),
        compiler_params=pltpu.CompilerParams(
            dimension_semantics=("parallel",),
            vmem_limit_bytes=VMEM_LIMIT_BYTES,
        ),
        cost_estimate=conv_cost,
    )(patches, w_mat)

    # ---- Tiny cross-tile combine + fold BN into scale/shift (wrapper) ----- #
    gamma_pad = jnp.pad(gamma.astype(jnp.float32), (0, cpad - cout))  # zero pad lanes
    beta_pad = jnp.pad(beta.astype(jnp.float32), (0, cpad - cout))
    ssum = jnp.sum(stats[:, 0, :], axis=0)
    ssq = jnp.sum(stats[:, 1, :], axis=0)
    inv_m = 1.0 / float(m)                       # divide by *real* element count
    mean = ssum * inv_m
    var = jnp.maximum(ssq * inv_m - mean * mean, 0.0)
    scale = gamma_pad * jax.lax.rsqrt(var + EPS)  # padded lanes -> scale = 0
    shift = beta_pad - mean * scale

    # ---- Pass 2: folded BN affine + LeakyReLU ------------------------------ #
    out_pad = pl.pallas_call(
        _bn_lrelu_kernel,
        grid=(num_tiles,),
        in_specs=[
            pl.BlockSpec((tile_m, cpad), lambda i: (i, 0)),
            pl.BlockSpec((1, cpad), lambda i: (0, 0)),
            pl.BlockSpec((1, cpad), lambda i: (0, 0)),
        ],
        out_specs=pl.BlockSpec((tile_m, cpad), lambda i: (i, 0)),
        out_shape=jax.ShapeDtypeStruct((mpad, cpad), jnp.float32),
        compiler_params=pltpu.CompilerParams(
            dimension_semantics=("parallel",),
            vmem_limit_bytes=VMEM_LIMIT_BYTES,
        ),
        cost_estimate=pl.CostEstimate(
            flops=3 * mpad * cpad,
            transcendentals=0,
            bytes_accessed=2 * mpad * cpad * 4 + 2 * cpad * 4,
        ),
    )(y_pad, scale.reshape(1, cpad), shift.reshape(1, cpad))

    return out_pad[:m, :cout].reshape(n, h, w, cout)


def conv_block(x_nchw, params, *, tile_m=None):
    """Full Conv_Block forward. x: (N, Cin, H, W) f32 -> (N, Cout, H, W) f32."""
    w1, g1, b1, w2, g2, b2 = params
    x = jnp.transpose(x_nchw, (0, 2, 3, 1))               # NHWC internally
    # Dropout2d(0.3): identity (eval semantics) -- see TODO(synk) above.
    h1 = _conv_bn_lrelu(x, w1, g1, b1, tile_m=tile_m)
    h2 = _conv_bn_lrelu(h1, w2, g2, b2, tile_m=tile_m)
    return jnp.transpose(h2, (0, 3, 1, 2))                 # back to NCHW


# --------------------------------------------------------------------------- #
# Pure-JAX reference (same bf16-rounded conv inputs as the kernel path)
# --------------------------------------------------------------------------- #
def _ref_layer(x_nchw, weight, gamma, beta):
    xb = x_nchw.astype(jnp.bfloat16).astype(jnp.float32)
    wb = weight.astype(jnp.bfloat16).astype(jnp.float32)
    xp = jnp.pad(xb, ((0, 0), (0, 0), (1, 1), (1, 1)), mode="reflect")
    y = jax.lax.conv_general_dilated(
        xp, wb, window_strides=(1, 1), padding="VALID",
        dimension_numbers=("NCHW", "OIHW", "NCHW"),
        precision=jax.lax.Precision.HIGHEST)
    mean = jnp.mean(y, axis=(0, 2, 3), keepdims=True)
    var = jnp.mean(y * y, axis=(0, 2, 3), keepdims=True) - mean * mean
    z = (y - mean) * jax.lax.rsqrt(var + EPS) * gamma.reshape(1, -1, 1, 1) \
        + beta.reshape(1, -1, 1, 1)
    return jnp.where(z >= 0, z, NEG_SLOPE * z)


def _reference(x, w1, g1, b1, w2, g2, b2):
    return _ref_layer(_ref_layer(x, w1, g1, b1), w2, g2, b2)


# --------------------------------------------------------------------------- #
if __name__ == "__main__":
    key = jax.random.PRNGKey(0)
    k_x, k_w1, k_w2 = jax.random.split(key, 3)

    N, Cin, H, W = 2, 4, 16, 16
    Cout = 8
    x = jax.random.normal(k_x, (N, Cin, H, W), dtype=jnp.float32)
    w1 = 0.1 * jax.random.normal(k_w1, (Cout, Cin, 3, 3), dtype=jnp.float32)
    w2 = 0.1 * jax.random.normal(k_w2, (Cout, Cout, 3, 3), dtype=jnp.float32)
    g1 = 1.0 + 0.1 * jnp.arange(Cout, dtype=jnp.float32)
    b1 = 0.05 * jnp.arange(Cout, dtype=jnp.float32)
    g2 = 1.0 - 0.05 * jnp.arange(Cout, dtype=jnp.float32)
    b2 = -0.02 * jnp.arange(Cout, dtype=jnp.float32)
    params = (w1, g1, b1, w2, g2, b2)

    # tile_m=128 -> M = 2*16*16 = 512 -> 4 grid tiles per pass (exercises the
    # tiled pipeline and the cross-tile partial-stats reduction).
    out = conv_block(x, params, tile_m=128)
    out = jax.block_until_ready(out)

    ref = _reference(x, w1, g1, b1, w2, g2, b2)
    assert out.shape == (N, Cout, H, W)
    # Tolerance reflects bf16 MXU inputs (inputs rounded identically in the ref).
    max_err = float(jnp.max(jnp.abs(out - ref)))
    assert jnp.allclose(out, ref, rtol=1e-2, atol=1e-2), f"mismatch: {max_err}"

    print("KERNEL_OK")
</pallas_src>

<mosaic_0001>
module attributes {stable_mosaic.version = 11 : i64} {
  func.func @_conv_stats_kernel(%arg0: i32, %arg1: memref<128x128xbf16, #tpu.memory_space<vmem>>, %arg2: memref<128x128xbf16, #tpu.memory_space<vmem>>, %arg3: memref<128x128xf32, #tpu.memory_space<vmem>>, %arg4: memref<1x8x128xf32, #tpu.memory_space<vmem>>) attributes {dimension_semantics = [#tpu.dimension_semantics<parallel>], iteration_bounds = array<i64: 4>, scalar_prefetch = 0 : i64, scratch_operands = 0 : i64, tpu.core_type = #tpu.core_type<tc>, window_params = [{transform_indices = @transform_0, window_bounds = array<i64: 128, 128>}, {pipeline_mode = #tpu.pipeline_mode<synchronous>, transform_indices = @transform_1, window_bounds = array<i64: 128, 128>}, {transform_indices = @transform_2, window_bounds = array<i64: 128, 128>}, {transform_indices = @transform_3, window_bounds = array<i64: 1, 8, 128>}]} {
    %c0 = arith.constant 0 : index
    %c0_0 = arith.constant 0 : index
    %0 = vector.load %arg1[%c0, %c0_0] : memref<128x128xbf16, #tpu.memory_space<vmem>>, vector<128x128xbf16>
    %c0_1 = arith.constant 0 : index
    %c0_2 = arith.constant 0 : index
    %1 = vector.load %arg2[%c0_1, %c0_2] : memref<128x128xbf16, #tpu.memory_space<vmem>>, vector<128x128xbf16>
    %cst = arith.constant dense<0.000000e+00> : vector<128x128xf32>
    %2 = tpu.matmul %0, %1, %cst {dimension_numbers = #tpu.dot_dimension_numbers<[1], [0], [0], [1], [0, 0, 1, 1], [], []>} : vector<128x128xbf16>, vector<128x128xbf16>, vector<128x128xf32> -> vector<128x128xf32>
    %c0_3 = arith.constant 0 : index
    %c0_4 = arith.constant 0 : index
    %3 = vector.load %arg3[%c0_3, %c0_4] : memref<128x128xf32, #tpu.memory_space<vmem>>, vector<128x128xf32>
    tpu.vector_store %arg3[%c0_3, %c0_4], %2 {strides = array<i32>} : memref<128x128xf32, #tpu.memory_space<vmem>>, vector<128x128xf32>,
    %cst_5 = arith.constant dense<0.000000e+00> : vector<128xf32>
    %4 = vector.multi_reduction <add>, %2, %cst_5 [0] : vector<128x128xf32> to vector<128xf32>
    %5 = vector.shape_cast %4 : vector<128xf32> to vector<1x128xf32>
    %6 = arith.mulf %2, %2 : vector<128x128xf32>
    %cst_6 = arith.constant dense<0.000000e+00> : vector<128xf32>
    %7 = vector.multi_reduction <add>, %6, %cst_6 [0] : vector<128x128xf32> to vector<128xf32>
    %8 = vector.shape_cast %7 : vector<128xf32> to vector<1x128xf32>
    %9 = tpu.iota {dimensions = array<i32: 0>} : vector<8x128xi32>
    %c0_i32 = arith.constant 0 : i32
    %10 = vector.broadcast %c0_i32 : i32 to vector<8x128xi32>
    %11 = arith.cmpi eq, %9, %10 : vector<8x128xi32>
    %cst_7 = arith.constant 1.000000e+00 : f32
    %cst_8 = arith.constant 0.000000e+00 : f32
    %12 = vector.broadcast %cst_7 : f32 to vector<8x128xf32>
    %13 = vector.broadcast %cst_8 : f32 to vector<8x128xf32>
    %14 = arith.select %11, %12, %13 : vector<8x128xi1>, vector<8x128xf32>
    %15 = vector.broadcast %5 : vector<1x128xf32> to vector<8x128xf32>
    %16 = arith.mulf %14, %15 : vector<8x128xf32>
    %c1_i32 = arith.constant 1 : i32
    %17 = vector.broadcast %c1_i32 : i32 to vector<8x128xi32>
    %18 = arith.cmpi eq, %9, %17 : vector<8x128xi32>
    %cst_9 = arith.constant 1.000000e+00 : f32
    %cst_10 = arith.constant 0.000000e+00 : f32
    %19 = vector.broadcast %cst_9 : f32 to vector<8x128xf32>
    %20 = vector.broadcast %cst_10 : f32 to vector<8x128xf32>
    %21 = arith.select %18, %19, %20 : vector<8x128xi1>, vector<8x128xf32>
    %22 = vector.broadcast %8 : vector<1x128xf32> to vector<8x128xf32>
    %23 = arith.mulf %21, %22 : vector<8x128xf32>
    %24 = arith.addf %16, %23 : vector<8x128xf32>
    %25 = vector.shape_cast %24 : vector<8x128xf32> to vector<1x8x128xf32>
    %c0_11 = arith.constant 0 : index
    %c0_12 = arith.constant 0 : index
    %c0_13 = arith.constant 0 : index
    %26 = vector.load %arg4[%c0_11, %c0_12, %c0_13] : memref<1x8x128xf32, #tpu.memory_space<vmem>>, vector<1x8x128xf32>
    tpu.vector_store %arg4[%c0_11, %c0_12, %c0_13], %25 {strides = array<i32>} : memref<1x8x128xf32, #tpu.memory_space<vmem>>, vector<1x8x128xf32>,
    return
  }
  func.func @transform_0(%arg0: i32) -> (i32, i32) {
    %c0_i32 = arith.constant 0 : i32
    %c0_i32_0 = arith.constant 0 : i32
    return %arg0, %c0_i32 : i32, i32
  }
  func.func @transform_1(%arg0: i32) -> (i32, i32) {
    %c0_i32 = arith.constant 0 : i32
    %c0_i32_0 = arith.constant 0 : i32
    %c0_i32_1 = arith.constant 0 : i32
    return %c0_i32, %c0_i32_0 : i32, i32
  }
  func.func @transform_2(%arg0: i32) -> (i32, i32) {
    %c0_i32 = arith.constant 0 : i32
    %c0_i32_0 = arith.constant 0 : i32
    return %arg0, %c0_i32 : i32, i32
  }
  func.func @transform_3(%arg0: i32) -> (i32, i32, i32) {
    %c0_i32 = arith.constant 0 : i32
    %c0_i32_0 = arith.constant 0 : i32
    %c0_i32_1 = arith.constant 0 : i32
    return %arg0, %c0_i32, %c0_i32_0 : i32, i32, i32
  }
}

</mosaic_0001>

<llo_original>
// kernel: tpu_custom_call.1
$region0: #{tpu_custom_call.1}
  #allocation0 [shape = 'u32[]', space=smem, size = 0x4, offset = 0x4, fixed_abs, tag = 'smem constant byte address 0x4 - core index']
  #allocation1 [shape = 'u32[72,128]{1,0:T(1,128)}', space=vmem, size = 0x9000, scoped, tag = 'internal scratch']
  %s0 = inlined_call_operand.hbm [shape: bf16[512,128], index: 0, kind: input, shape index: {}]
  %s1 = inlined_call_operand.hbm [shape: bf16[128,128], index: 1, kind: input, shape index: {}]
  %s2 = inlined_call_operand.hbm [shape: f32[512,128], index: 2, kind: output, shape index: {0}]
  %s3 = inlined_call_operand.hbm [shape: f32[4,8,128], index: 3, kind: output, shape index: {1}]
  %4 = xla_tuple %s2, %s3
  %s5 = sld [smem:[#allocation0]]
  $region57: #{tpu_custom_call.1} parent=0
    _
  %s7 = ssub.s32 1, %s5
  %s8 = scalar_select 0, %s7, %s5
  $region1: #{tpu_custom_call.1} parent=0
    #allocation2 [shape = 'u8[65536]{0}', space=vmem, size = 0x10000, scoped, tag = 'input window, operand 0']
    #allocation3 [shape = 's32[2]{0}', space=sflag, size = 0x8, scoped, tag = 'scoped memory for tpu_custom_call.1']
    #allocation4 [shape = 's32[2]{0}', space=sflag, size = 0x8, scoped, tag = 'scoped memory for tpu_custom_call.1']
    #allocation5 [shape = 'u8[32768]{0}', space=vmem, size = 0x8000, scoped, tag = 'input window, operand 1, single buffered']
    #allocation6 [shape = 's32[1]{0}', space=sflag, size = 0x4, scoped, tag = 'scoped memory for tpu_custom_call.1']
    #allocation7 [shape = 'u8[131072]{0}', space=vmem, size = 0x20000, scoped, tag = 'output window, operand 0']
    #allocation8 [shape = 'u8[8192]{0}', space=vmem, size = 0x2000, scoped, tag = 'output window, operand 1']
    #allocation9 [shape = 's32[2]{0}', space=sflag, size = 0x8, scoped, tag = 'scoped memory for tpu_custom_call.1']
    %9 = vsyncpa [#allocation3], 0
    %s10 = scalar_lea.sflag [#allocation3], 1
    %11 = vsyncpa %s10, 0
    %12 = vsyncpa [#allocation6], 0
    %13 = vsyncpa [#allocation4], 0
    %s14 = scalar_lea.sflag [#allocation4], 1
    %15 = vsyncpa %s14, 0
    %16 = vsyncpa [#allocation9], 0
    %s17 = scalar_lea.sflag [#allocation9], 1
    %18 = vsyncpa %s17, 0
    loop: start=0, step=1, limit=6
    $region2: #{tpu_custom_call.1} parent=1 // loop_pre_header
      _
    $region3: #{tpu_custom_call.1} parent=1 // loop_header
      %s20 = sphi 0, %s24
      %p21 = scmp.ge.s32.totalorder %s20, 6
      %s30 = sphi 0, %s32
      %s33 = sphi 0, %s30
      %s34 = sphi 0, %s33
      %s50 = sphi 0, %s34
      %s54 = sphi 0, %s54
      %s56 = sphi 0, %s54
      %s57 = sphi 0, %s56
      %s71 = sphi 0, %s57
      %s77 = sphi 0, %s79
      %s80 = sphi 0, %s77
      %s81 = sphi 0, %s80
      %s97 = sphi 0, %s81
      %s103 = sphi 0, %s105
      %s106 = sphi 0, %s103
      %s107 = sphi 0, %s106
      %s123 = sphi 0, %s107
    $region4: #{tpu_custom_call.1} parent=1 // loop_header_branch
      %23 = sbr.rel (%p21) target = $region8
    $region5: #{tpu_custom_call.1} parent=1 // loop_body
      %s25 = ssub.s32 %s20, 1
      %s26 = ssub.s32 %s20, 2
      %s27 = sadd.s32 %s20, 1
      %s28 = ssub.s32 %s20, %s27
      %p29 = scmp.eq.s32.totalorder %s28, 0
      %s31 = sadd.s32 %s30, 1
      %s32 = scalar_select %p29, %s30, %s31
      %p35 = pneg %p29
      %p36 = scmp.eq.s32.totalorder %s20, 3
      %p37 = por %p35, %p36
      %p38 = scmp.ne.s32.totalorder %s30, %s33
      %p39 = scmp.eq.s32.totalorder %s20, 0
      %p40 = por %p38, %p39
      %p41 = scmp.ne.s32.totalorder %s30, %s33
      %p42 = scmp.eq.s32.totalorder %s25, 3
      %p43 = por %p41, %p42
      %p44 = scmp.ne.s32.totalorder %s33, %s34
      %p45 = scmp.eq.s32.totalorder %s25, 0
      %p46 = por %p44, %p45
      %p47 = scmp.ne.s32.totalorder %s33, %s34
      %p48 = scmp.eq.s32.totalorder %s26, 3
      %p49 = por %p47, %p48
      %p51 = scmp.ne.s32.totalorder %s34, %s50
      %p52 = scmp.eq.s32.totalorder %s26, 0
      %p53 = por %p51, %p52
      %s55 = sadd.s32 %s54, 1
      %p58 = scmp.eq.s32.totalorder %s20, 3
      %p59 = scmp.ne.s32.totalorder %s54, %s56
      %p60 = scmp.eq.s32.totalorder %s20, 0
      %p61 = por %p59, %p60
      %p62 = scmp.ne.s32.totalorder %s54, %s56
      %p63 = scmp.eq.s32.totalorder %s25, 3
      %p64 = por %p62, %p63
      %p65 = scmp.ne.s32.totalorder %s56, %s57
      %p66 = scmp.eq.s32.totalorder %s25, 0
      %p67 = por %p65, %p66
      %p68 = scmp.ne.s32.totalorder %s56, %s57
      %p69 = scmp.eq.s32.totalorder %s26, 3
      %p70 = por %p68, %p69
      %p72 = scmp.ne.s32.totalorder %s57, %s71
      %p73 = scmp.eq.s32.totalorder %s26, 0
      %p74 = por %p72, %p73
      %s75 = ssub.s32 %s20, %s27
      %p76 = scmp.eq.s32.totalorder %s75, 0
      %s78 = sadd.s32 %s77, 1
      %s79 = scalar_select %p76, %s77, %s78
      %p82 = pneg %p76
      %p83 = scmp.eq.s32.totalorder %s20, 3
      %p84 = por %p82, %p83
      %p85 = scmp.ne.s32.totalorder %s77, %s80
      %p86 = scmp.eq.s32.totalorder %s20, 0
      %p87 = por %p85, %p86
      %p88 = scmp.ne.s32.totalorder %s77, %s80
      %p89 = scmp.eq.s32.totalorder %s25, 3
      %p90 = por %p88, %p89
      %p91 = scmp.ne.s32.totalorder %s80, %s81
      %p92 = scmp.eq.s32.totalorder %s25, 0
      %p93 = por %p91, %p92
      %p94 = scmp.ne.s32.totalorder %s80, %s81
      %p95 = scmp.eq.s32.totalorder %s26, 3
      %p96 = por %p94, %p95
      %p98 = scmp.ne.s32.totalorder %s81, %s97
      %p99 = scmp.eq.s32.totalorder %s26, 0
      %p100 = por %p98, %p99
      %s101 = ssub.s32 %s20, %s27
      %p102 = scmp.eq.s32.totalorder %s101, 0
      %s104 = sadd.s32 %s103, 1
      %s105 = scalar_select %p102, %s103, %s104
      %p108 = pneg %p102
      %p109 = scmp.eq.s32.totalorder %s20, 3
      %p110 = por %p108, %p109
      %p111 = scmp.ne.s32.totalorder %s103, %s106
      %p112 = scmp.eq.s32.totalorder %s20, 0
      %p113 = por %p111, %p112
      %p114 = scmp.ne.s32.totalorder %s103, %s106
      %p115 = scmp.eq.s32.totalorder %s25, 3
      %p116 = por %p114, %p115
      %p117 = scmp.ne.s32.totalorder %s106, %s107
      %p118 = scmp.eq.s32.totalorder %s25, 0
      %p119 = por %p117, %p118
      %p120 = scmp.ne.s32.totalorder %s106, %s107
      %p121 = scmp.eq.s32.totalorder %s26, 3
      %p122 = por %p120, %p121
      %p124 = scmp.ne.s32.totalorder %s107, %s123
      %p125 = scmp.eq.s32.totalorder %s26, 0
      %p126 = por %p124, %p125
      %p127 = scmp.le.s32.totalorder 1, %s20
      %p128 = scmp.lt.s32.totalorder %s20, 5
      %p129 = pnand %p127, %p128
      %p130 = pneg %p129
      // Predicated region
      $region9: #{tpu_custom_call.1} parent=5 // pred_check
        _
      $region10: #{tpu_custom_call.1} parent=5 // pred_check_branch
        %132 = sbr.rel (%p129) target = $region12
      $region11: #{tpu_custom_call.1} parent=5 // pred_region
        %s133 = ssub.s32 %s20, 1
        // Predicated region
        $region13: #{tpu_custom_call.1} parent=11 // pred_check
          %p134 = pneg %p67
        $region14: #{tpu_custom_call.1} parent=11 // pred_check_branch
          %136 = sbr.rel (%p134) target = $region16
        $region15: #{tpu_custom_call.1} parent=11 // pred_region
          %138 = vsyncadd [#allocation6], 0
          %s139 = sshll.u32 %s1, 4
          %s140 = int_to_ptr.hbm [resolvable:$true] %s139
          %s141 = sshll.u32 [#allocation5], 4
          %s142 = int_to_ptr.vmem [resolvable:$true] %s141
          %147 = dma.hbm_to_vmem [thread:$0]  %s140, 1024, %s142, [#allocation6], 64, 64, 4
        $region16: #{tpu_custom_call.1} parent=11 // pred_fallthru
          _
      $region12: #{tpu_custom_call.1} parent=5 // pred_fallthru
        _
      %p148 = scmp.lt.s32.totalorder %s20, 4
      // Predicated region
      $region17: #{tpu_custom_call.1} parent=5 // pred_check
        %p149 = pneg %p148
      $region18: #{tpu_custom_call.1} parent=5 // pred_check_branch
        %151 = sbr.rel (%p149) target = $region20
      $region19: #{tpu_custom_call.1} parent=5 // pred_region
        // Predicated region
        $region21: #{tpu_custom_call.1} parent=19 // pred_check
          %p152 = pneg %p40
        $region22: #{tpu_custom_call.1} parent=19 // pred_check_branch
          %154 = sbr.rel (%p152) target = $region24
        $region23: #{tpu_custom_call.1} parent=19 // pred_region
          %s155 = sand.u32 %s30, 1
          %s156 = scalar_lea.sflag [#allocation3], %s155
          %s157 = sand.u32 %s30, 1
          %s158 = smul.addr %s157, 64
          %s159 = scalar_lea.vmem [#allocation2], %s158
          %s160 = smul.u32 16, %s20
          %162 = vsyncadd %s156, 0
          %s163 = smul.addr %s160, 4
          %s164 = scalar_lea.hbm %s0, %s163
          %s165 = sshll.u32 %s164, 4
          %s166 = int_to_ptr.hbm [resolvable:$true] %s165
          %s167 = sshll.u32 %s159, 4
          %s168 = int_to_ptr.vmem [resolvable:$true] %s167
          %173 = dma.hbm_to_vmem [thread:$0]  %s166, 1024, %s168, %s156, 64, 64, 4
        $region24: #{tpu_custom_call.1} parent=19 // pred_fallthru
          _
      $region20: #{tpu_custom_call.1} parent=5 // pred_fallthru
        _
      %p174 = scmp.le.s32.totalorder 1, %s20
      %p175 = scmp.lt.s32.totalorder %s20, 5
      %p176 = pnand %p174, %p175
      %p177 = pneg %p176
      // Predicated region
      $region25: #{tpu_custom_call.1} parent=5 // pred_check
        _
      $region26: #{tpu_custom_call.1} parent=5 // pred_check_branch
        %179 = sbr.rel (%p176) target = $region28
      $region27: #{tpu_custom_call.1} parent=5 // pred_region
        %s180 = ssub.s32 %s20, 1
        %s181 = sand.u32 %s33, 1
        %s182 = scalar_lea.sflag [#allocation3], %s181
        %s183 = sand.u32 %s33, 1
        %s184 = smul.addr %s183, 64
        %s185 = scalar_lea.vmem [#allocation2], %s184
        // Predicated region
        $region29: #{tpu_custom_call.1} parent=27 // pred_check
          %p186 = pneg %p46
        $region30: #{tpu_custom_call.1} parent=27 // pred_check_branch
          %188 = sbr.rel (%p186) target = $region32
        $region31: #{tpu_custom_call.1} parent=27 // pred_region
          %190 = dma.done %s182, 1024
        $region32: #{tpu_custom_call.1} parent=27 // pred_fallthru
          _
        // Predicated region
        $region33: #{tpu_custom_call.1} parent=27 // pred_check
          %p191 = pneg %p67
        $region34: #{tpu_custom_call.1} parent=27 // pred_check_branch
          %193 = sbr.rel (%p191) target = $region36
        $region35: #{tpu_custom_call.1} parent=27 // pred_region
          %195 = dma.done [#allocation6], 1024
        $region36: #{tpu_custom_call.1} parent=27 // pred_fallthru
          _
        %s196 = sand.u32 %s33, 1
        %s197 = scalar_lea.sflag [#allocation3], %s196
        %s198 = sand.u32 %s33, 1
        %s199 = smul.addr %s198, 64
        %s200 = scalar_lea.vmem [#allocation2], %s199
        %p201 = pneg %p46
        %p202 = pneg %p43
        %p203 = pneg %p67
        %p204 = pneg %p64
        %p205 = pneg %p93
        %p206 = pneg %p90
        %s207 = sand.u32 %s80, 1
        %s208 = scalar_lea.sflag [#allocation4], %s207
        %s209 = sand.u32 %s80, 1
        %s210 = smul.addr %s209, 128
        %s211 = scalar_lea.vmem [#allocation7], %s210
        %p212 = pneg %p119
        %p213 = pneg %p116
        %s214 = sand.u32 %s106, 1
        %s215 = scalar_lea.sflag [#allocation9], %s214
        %s216 = sand.u32 %s106, 1
        %s217 = smul.addr %s216, 8
        %s218 = scalar_lea.vmem [#allocation8], %s217
        %s219 = smul.u32 16, %s25
        %s220 = smul.u32 16, %s25
        %v221 = vld [vmem:[%s185] sm:$0xf]
        %v222 = vld [vmem:[%s185 + $0x4] sm:$0xf]
        %v223 = vld [vmem:[%s185 + $0x8] sm:$0xf]
        %v224 = vld [vmem:[%s185 + $0xc] sm:$0xf]
        %v225 = vld [vmem:[%s185 + $0x10] sm:$0xf]
        %v226 = vld [vmem:[%s185 + $0x14] sm:$0xf]
        %v227 = vld [vmem:[%s185 + $0x18] sm:$0xf]
        %v228 = vld [vmem:[%s185 + $0x1c] sm:$0xf]
        %v229 = vld [vmem:[%s185 + $0x20] sm:$0xf]
        %v230 = vld [vmem:[%s185 + $0x24] sm:$0xf]
        %v231 = vld [vmem:[%s185 + $0x28] sm:$0xf]
        %v232 = vld [vmem:[%s185 + $0x2c] sm:$0xf]
        %v233 = vld [vmem:[%s185 + $0x30] sm:$0xf]
        %v234 = vld [vmem:[%s185 + $0x34] sm:$0xf]
        %v235 = vld [vmem:[%s185 + $0x38] sm:$0xf]
        %v236 = vld [vmem:[%s185 + $0x3c] sm:$0xf]
        %v237 = vld [vmem:[#allocation5] sm:$0xf]
        %v238 = vld [vmem:[#allocation5 + $0x4] sm:$0xf]
        %v239 = vld [vmem:[#allocation5 + $0x8] sm:$0xf]
        %v240 = vld [vmem:[#allocation5 + $0xc] sm:$0xf]
        %v241 = vld [vmem:[#allocation5 + $0x10] sm:$0xf]
        %v242 = vld [vmem:[#allocation5 + $0x14] sm:$0xf]
        %v243 = vld [vmem:[#allocation5 + $0x18] sm:$0xf]
        %v244 = vld [vmem:[#allocation5 + $0x1c] sm:$0xf]
        %v245 = vld [vmem:[#allocation5 + $0x20] sm:$0xf]
        %v246 = vld [vmem:[#allocation5 + $0x24] sm:$0xf]
        %v247 = vld [vmem:[#allocation5 + $0x28] sm:$0xf]
        %v248 = vld [vmem:[#allocation5 + $0x2c] sm:$0xf]
        %v249 = vld [vmem:[#allocation5 + $0x30] sm:$0xf]
        %v250 = vld [vmem:[#allocation5 + $0x34] sm:$0xf]
        %v251 = vld [vmem:[#allocation5 + $0x38] sm:$0xf]
        %v252 = vld [vmem:[#allocation5 + $0x3c] sm:$0xf]
        %v269 = vunpack.c.l.b16 %v221
        %v270 = vunpack.c.l.b16 %v222
        %v271 = vunpack.c.l.b16 %v223
        %v272 = vunpack.c.l.b16 %v224
        %v273 = vunpack.c.l.b16 %v225
        %v274 = vunpack.c.l.b16 %v226
        %v275 = vunpack.c.l.b16 %v227
        %v276 = vunpack.c.l.b16 %v228
        %v277 = vunpack.c.l.b16 %v229
        %v278 = vunpack.c.l.b16 %v230
        %v279 = vunpack.c.l.b16 %v231
        %v280 = vunpack.c.l.b16 %v232
        %v281 = vunpack.c.l.b16 %v233
        %v282 = vunpack.c.l.b16 %v234
        %v283 = vunpack.c.l.b16 %v235
        %v284 = vunpack.c.l.b16 %v236
        %v285 = vpack.c.b16 %v270, %v269
        %v286 = vpack.c.b16 %v272, %v271
        %v287 = vpack.c.b16 %v274, %v273
        %v288 = vpack.c.b16 %v276, %v275
        %v289 = vpack.c.b16 %v278, %v277
        %v290 = vpack.c.b16 %v280, %v279
        %v291 = vpack.c.b16 %v282, %v281
        %v292 = vpack.c.b16 %v284, %v283
        %v317 = vunpack.c.l.b16 %v237
        %v318 = vunpack.c.l.b16 %v238
        %v319 = vunpack.c.l.b16 %v239
        %v320 = vunpack.c.l.b16 %v240
        %v321 = vunpack.c.l.b16 %v241
        %v322 = vunpack.c.l.b16 %v242
        %v323 = vunpack.c.l.b16 %v243
        %v324 = vunpack.c.l.b16 %v244
        %v325 = vunpack.c.l.b16 %v245
        %v326 = vunpack.c.l.b16 %v246
        %v327 = vunpack.c.l.b16 %v247
        %v328 = vunpack.c.l.b16 %v248
        %v329 = vunpack.c.l.b16 %v249
        %v330 = vunpack.c.l.b16 %v250
        %v331 = vunpack.c.l.b16 %v251
        %v332 = vunpack.c.l.b16 %v252
        %v333 = vpack.c.b16 %v318, %v317
        %v334 = vpack.c.b16 %v320, %v319
        %v335 = vpack.c.b16 %v322, %v321
        %v336 = vpack.c.b16 %v324, %v323
        %v337 = vpack.c.b16 %v326, %v325
        %v338 = vpack.c.b16 %v328, %v327
        %v339 = vpack.c.b16 %v330, %v329
        %v340 = vpack.c.b16 %v332, %v331
        %349 = vmatpush.bf16.msra.mxu0 %v340
        %350 = vmatpush.bf16.msra.mxu0 %v339
        %351 = vmatpush.bf16.msra.mxu0 %v338
        %352 = vmatpush.bf16.msra.mxu0 %v337
        %353 = vmatpush.bf16.msra.mxu0 %v336
        %354 = vmatpush.bf16.msra.mxu0 %v335
        %355 = vmatpush.bf16.msra.mxu0 %v334
        %356 = vmatpush.bf16.msra.mxu0 %v333
        %357 = vmatmul.bf16.gmra.mxu0 %v285
        %v358 = vpop.f32.mrf.mxu0
        %v359 = vadd.f32 0.0, %v358
        %v360 = vpop.f32.mrf.mxu0
        %v361 = vadd.f32 0.0, %v360
        %362 = vmatmul.bf16.gmra.mxu0 %v286
        %v363 = vpop.f32.mrf.mxu0
        %v364 = vadd.f32 0.0, %v363
        %v365 = vpop.f32.mrf.mxu0
        %v366 = vadd.f32 0.0, %v365
        %367 = vmatmul.bf16.gmra.mxu0 %v287
        %v368 = vpop.f32.mrf.mxu0
        %v369 = vadd.f32 0.0, %v368
        %v370 = vpop.f32.mrf.mxu0
        %v371 = vadd.f32 0.0, %v370
        %372 = vmatmul.bf16.gmra.mxu0 %v288
        %v373 = vpop.f32.mrf.mxu0
        %v374 = vadd.f32 0.0, %v373
        %v375 = vpop.f32.mrf.mxu0
        %v376 = vadd.f32 0.0, %v375
        %377 = vmatmul.bf16.gmra.mxu0 %v289
        %v378 = vpop.f32.mrf.mxu0
        %v379 = vadd.f32 0.0, %v378
        %v380 = vpop.f32.mrf.mxu0
        %v381 = vadd.f32 0.0, %v380
        %382 = vmatmul.bf16.gmra.mxu0 %v290
        %v383 = vpop.f32.mrf.mxu0
        %v384 = vadd.f32 0.0, %v383
        %v385 = vpop.f32.mrf.mxu0
        %v386 = vadd.f32 0.0, %v385
        %387 = vmatmul.bf16.gmra.mxu0 %v291
        %v388 = vpop.f32.mrf.mxu0
        %v389 = vadd.f32 0.0, %v388
        %v390 = vpop.f32.mrf.mxu0
        %v391 = vadd.f32 0.0, %v390
        %392 = vmatmul.bf16.gmra.mxu0 %v292
        %v393 = vpop.f32.mrf.mxu0
        %v394 = vadd.f32 0.0, %v393
        %v395 = vpop.f32.mrf.mxu0
        %v396 = vadd.f32 0.0, %v395
        %397 = vdwg.mxu0
        %398 = vst [vmem:[%s211] sm:$0xff] %v359
        %399 = vst [vmem:[%s211 + $0x8] sm:$0xff] %v361
        %400 = vst [vmem:[%s211 + $0x10] sm:$0xff] %v364
        %401 = vst [vmem:[%s211 + $0x18] sm:$0xff] %v366
        %402 = vst [vmem:[%s211 + $0x20] sm:$0xff] %v369
        %403 = vst [vmem:[%s211 + $0x28] sm:$0xff] %v371
        %404 = vst [vmem:[%s211 + $0x30] sm:$0xff] %v374
        %405 = vst [vmem:[%s211 + $0x38] sm:$0xff] %v376
        %406 = vst [vmem:[%s211 + $0x40] sm:$0xff] %v379
        %407 = vst [vmem:[%s211 + $0x48] sm:$0xff] %v381
        %408 = vst [vmem:[%s211 + $0x50] sm:$0xff] %v384
        %409 = vst [vmem:[%s211 + $0x58] sm:$0xff] %v386
        %410 = vst [vmem:[%s211 + $0x60] sm:$0xff] %v389
        %411 = vst [vmem:[%s211 + $0x68] sm:$0xff] %v391
        %412 = vst [vmem:[%s211 + $0x70] sm:$0xff] %v394
        %413 = vst [vmem:[%s211 + $0x78] sm:$0xff] %v396
        %v414 = vadd.f32 %v359, %v361
        %v415 = vadd.f32 %v414, %v364
        %v416 = vadd.f32 %v415, %v366
        %v417 = vadd.f32 %v416, %v369
        %v418 = vadd.f32 %v417, %v371
        %v419 = vadd.f32 %v418, %v374
        %v420 = vadd.f32 %v419, %v376
        %v421 = vadd.f32 %v420, %v379
        %v422 = vadd.f32 %v421, %v381
        %v423 = vadd.f32 %v422, %v384
        %v424 = vadd.f32 %v423, %v386
        %v425 = vadd.f32 %v424, %v389
        %v426 = vadd.f32 %v425, %v391
        %v427 = vadd.f32 %v426, %v394
        %v428 = vadd.f32 %v427, %v396
        %v429 = vrot.slane %v428, 4
        %v430 = vadd.f32 %v428, %v429
        %v431 = vrot.slane %v430, 2
        %v432 = vadd.f32 %v430, %v431
        %v433 = vrot.slane %v432, 1
        %v434 = vadd.f32 %v432, %v433
        %v435 = vmul.f32 %v359, %v359
        %v436 = vmul.f32 %v361, %v361
        %v437 = vmul.f32 %v364, %v364
        %v438 = vmul.f32 %v366, %v366
        %v439 = vmul.f32 %v369, %v369
        %v440 = vmul.f32 %v371, %v371
        %v441 = vmul.f32 %v374, %v374
        %v442 = vmul.f32 %v376, %v376
        %v443 = vmul.f32 %v379, %v379
        %v444 = vmul.f32 %v381, %v381
        %v445 = vmul.f32 %v384, %v384
        %v446 = vmul.f32 %v386, %v386
        %v447 = vmul.f32 %v389, %v389
        %v448 = vmul.f32 %v391, %v391
        %v449 = vmul.f32 %v394, %v394
        %v450 = vmul.f32 %v396, %v396
        %v451 = vadd.f32 %v435, %v436
        %v452 = vadd.f32 %v451, %v437
        %v453 = vadd.f32 %v452, %v438
        %v454 = vadd.f32 %v453, %v439
        %v455 = vadd.f32 %v454, %v440
        %v456 = vadd.f32 %v455, %v441
        %v457 = vadd.f32 %v456, %v442
        %v458 = vadd.f32 %v457, %v443
        %v459 = vadd.f32 %v458, %v444
        %v460 = vadd.f32 %v459, %v445
        %v461 = vadd.f32 %v460, %v446
        %v462 = vadd.f32 %v461, %v447
        %v463 = vadd.f32 %v462, %v448
        %v464 = vadd.f32 %v463, %v449
        %v465 = vadd.f32 %v464, %v450
        %v466 = vrot.slane %v465, 4
        %v467 = vadd.f32 %v465, %v466
        %v468 = vrot.slane %v467, 2
        %v469 = vadd.f32 %v467, %v468
        %v470 = vrot.slane %v469, 1
        %v471 = vadd.f32 %v469, %v470
        %v472 = vlaneseq
        %v473 = vshrl.u32 %v472, 7
        %vm474 = vcmp.eq.s32.totalorder %v473, 0
        %v475 = vsel %vm474, 1.0, 0.0
        %v476 = vmul.f32 %v475, %v434
        %vm477 = vcmp.eq.s32.totalorder %v473, 1
        %v478 = vsel %vm477, 1.0, 0.0
        %v479 = vmul.f32 %v478, %v471
        %v480 = vadd.f32 %v476, %v479
        %481 = vst [vmem:[%s218] sm:$0xff] %v480
        %s482 = sand.u32 %s80, 1
        %s483 = scalar_lea.sflag [#allocation4], %s482
        %s484 = sand.u32 %s80, 1
        %s485 = smul.addr %s484, 128
        %s486 = scalar_lea.vmem [#allocation7], %s485
        %s487 = sand.u32 %s106, 1
        %s488 = scalar_lea.sflag [#allocation9], %s487
        %s489 = sand.u32 %s106, 1
        %s490 = smul.addr %s489, 8
        %s491 = scalar_lea.vmem [#allocation8], %s490
        // Predicated region
        $region37: #{tpu_custom_call.1} parent=27 // pred_check
          %p492 = pneg %p90
        $region38: #{tpu_custom_call.1} parent=27 // pred_check_branch
          %494 = sbr.rel (%p492) target = $region40
        $region39: #{tpu_custom_call.1} parent=27 // pred_region
          %s495 = smul.u32 16, %s25
          %497 = vsyncadd %s483, 0
          %s498 = smul.addr %s495, 8
          %s499 = scalar_lea.hbm %s2, %s498
          %s500 = sshll.u32 %s486, 4
          %s501 = int_to_ptr.vmem [resolvable:$true] %s500
          %s502 = sshll.u32 %s499, 4
          %s503 = int_to_ptr.hbm [resolvable:$true] %s502
          %508 = dma.vmem_to_hbm [thread:$0]  %s501, 2048, %s503, %s483, 128, 128, 8
        $region40: #{tpu_custom_call.1} parent=27 // pred_fallthru
          _
        // Predicated region
        $region41: #{tpu_custom_call.1} parent=27 // pred_check
          %p509 = pneg %p116
        $region42: #{tpu_custom_call.1} parent=27 // pred_check_branch
          %511 = sbr.rel (%p509) target = $region44
        $region43: #{tpu_custom_call.1} parent=27 // pred_region
          %513 = vsyncadd %s488, 0
          %s514 = smul.addr %s25, 8
          %s515 = scalar_lea.hbm %s3, %s514
          %s517 = sshll.u32 %s491, 4
          %s518 = int_to_ptr.vmem [resolvable:$true] %s517
          %s519 = sshll.u32 %s515, 4
          %s520 = int_to_ptr.hbm [resolvable:$true] %s519
          %522 = dma.vmem_to_hbm [thread:$0]  %s518, 128, %s520, %s488
        $region44: #{tpu_custom_call.1} parent=27 // pred_fallthru
          _
      $region28: #{tpu_custom_call.1} parent=5 // pred_fallthru
        _
      %p523 = scmp.le.s32.totalorder 2, %s20
      // Predicated region
      $region45: #{tpu_custom_call.1} parent=5 // pred_check
        %p524 = pneg %p523
      $region46: #{tpu_custom_call.1} parent=5 // pred_check_branch
        %526 = sbr.rel (%p524) target = $region48
      $region47: #{tpu_custom_call.1} parent=5 // pred_region
        %s527 = ssub.s32 %s20, 2
        // Predicated region
        $region49: #{tpu_custom_call.1} parent=47 // pred_check
          %p528 = pneg %p96
        $region50: #{tpu_custom_call.1} parent=47 // pred_check_branch
          %530 = sbr.rel (%p528) target = $region52
        $region51: #{tpu_custom_call.1} parent=47 // pred_region
          %s531 = sand.u32 %s81, 1
          %s532 = scalar_lea.sflag [#allocation4], %s531
          %s533 = sand.u32 %s81, 1
          %s534 = smul.addr %s533, 128
          %s535 = scalar_lea.vmem [#allocation7], %s534
          %537 = dma.done %s532, 2048
        $region52: #{tpu_custom_call.1} parent=47 // pred_fallthru
          _
        // Predicated region
        $region53: #{tpu_custom_call.1} parent=47 // pred_check
          %p538 = pneg %p122
        $region54: #{tpu_custom_call.1} parent=47 // pred_check_branch
          %540 = sbr.rel (%p538) target = $region56
        $region55: #{tpu_custom_call.1} parent=47 // pred_region
          %s541 = sand.u32 %s107, 1
          %s542 = scalar_lea.sflag [#allocation9], %s541
          %s543 = sand.u32 %s107, 1
          %s544 = smul.addr %s543, 8
          %s545 = scalar_lea.vmem [#allocation8], %s544
          %547 = dma.done %s542, 128
        $region56: #{tpu_custom_call.1} parent=47 // pred_fallthru
          _
      $region48: #{tpu_custom_call.1} parent=5 // pred_fallthru
        _
    $region6: #{tpu_custom_call.1} parent=1 // loop_footer
      %s24 = sadd.s32 1, %s20
    $region7: #{tpu_custom_call.1} parent=1 // loop_footer_branch
      %19 = sbr.rel target = $region3
    $region8: #{tpu_custom_call.1} parent=1 // loop_exit
      _
    %548 = vsyncpa [#allocation3], 1
    %s549 = scalar_lea.sflag [#allocation3], 1
    %550 = vsyncpa %s549, 1
    %551 = vsyncpa [#allocation6], 1
    %552 = vsyncpa [#allocation4], 1
    %s553 = scalar_lea.sflag [#allocation4], 1
    %554 = vsyncpa %s553, 1
    %555 = vsyncpa [#allocation9], 1
    %s556 = scalar_lea.sflag [#allocation9], 1
    %557 = vsyncpa %s556, 1

</llo_original>
